<compile_context>
chip_gen: v5e
topology: v5e:2x2
jax: 0.10.0
libtpu: 0.0.40
codegen_flags: <defaults>
</compile_context>

<pallas_src>
import jax
import jax.numpy as jnp
from jax import lax
from jax.experimental import pallas as pl
from jax.experimental.pallas import tpu as pltpu


def _round_up(x, m):
    return (x + m - 1) // m * m


def _embedding_bag_fc_kernel(text_ref, bag_ref, w_ref,      # per-token inputs
                             emb_ref, wt_ref, b_ref,        # grid-invariant params
                             out_ref,                       # (TB, C_pad) output
                             counts_ref):                   # (TB, V) VMEM scratch
    b_tile = pl.program_id(0)          # bag-tile index   ("parallel")
    t_chunk = pl.program_id(1)         # token-chunk index ("arbitrary", innermost)
    TB, V = counts_ref.shape
    TOK = bag_ref.shape[1]

    @pl.when(t_chunk == 0)
    def _init():
        counts_ref[...] = jnp.zeros_like(counts_ref)

    # Weighted bag-assignment matrix: assign[r, j] = 1/|bag| if token j belongs
    # to bag (b_tile*TB + r), else 0.  Padding tokens carry bag_id = -1.
    bag_iota = lax.broadcasted_iota(jnp.int32, (TB, TOK), 0) + b_tile * TB
    assign = jnp.where(bag_ref[...] == bag_iota, w_ref[...], 0.0)      # (TB, TOK)

    # Vocabulary one-hot for this token chunk (token ids are a column vector,
    # so tokens land on sublanes and vocab on lanes -> standard MXU layout).
    v_iota = lax.broadcasted_iota(jnp.int32, (TOK, V), 1)
    onehot = (text_ref[...] == v_iota).astype(jnp.float32)             # (TOK, V)

    # MXU "gather": accumulate per-bag mean weights over the vocabulary.
    counts_ref[...] += jnp.dot(assign, onehot, preferred_element_type=jnp.float32)

    @pl.when(t_chunk == pl.num_programs(1) - 1)
    def _finalize():
        means = jnp.dot(counts_ref[...], emb_ref[...],
                        preferred_element_type=jnp.float32)            # (TB, E)
        out_ref[...] = (
            jnp.dot(means, wt_ref[...], preferred_element_type=jnp.float32)
            + b_ref[...]
        )


def prepare_params(emb_table, fc_w, fc_b):
    """One-time parameter prep (padding / transpose hoisted out of the forward)."""
    V, E = emb_table.shape
    C = fc_w.shape[0]
    C_pad = _round_up(max(C, 128), 128)        # lane-dense output tile
    emb = emb_table.astype(jnp.float32)
    w_t = jnp.zeros((E, C_pad), jnp.float32).at[:, :C].set(
        fc_w.astype(jnp.float32).T)
    bias = jnp.zeros((1, C_pad), jnp.float32).at[0, :C].set(
        fc_b.astype(jnp.float32))
    return emb, w_t, bias, C


def text_classification_forward(text, offsets, params, *, bag_tile=128, tok_chunk=256):
    """text: [T] int32 token ids, offsets: [B] int32 bag starts, params: prepare_params()."""
    emb, w_t, bias, num_class = params
    V, E = emb.shape
    C_pad = w_t.shape[1]

    text = text.astype(jnp.int32)
    offsets = offsets.astype(jnp.int32)
    T = int(text.shape[0])
    B = int(offsets.shape[0])

    # Vectorized index preprocessing (cheap O(T log B) XLA work); the heavy
    # gather / reduce / classify stays inside the kernel.
    positions = jnp.arange(T, dtype=jnp.int32)
    bag_id = (jnp.searchsorted(offsets, positions, side="right") - 1).astype(jnp.int32)
    ends = jnp.concatenate([offsets[1:], jnp.full((1,), T, jnp.int32)])
    bag_len = jnp.maximum((ends - offsets).astype(jnp.float32), 1.0)
    inv_len = (1.0 / bag_len)[bag_id]          # mean folded into per-token weights

    # Tiling: token chunk = MXU contraction dim; >= 2 bag tiles for v7x megacore.
    TOK = min(tok_chunk, _round_up(max(T, 1), 128))
    T_pad = _round_up(max(T, 1), TOK)
    TB = min(bag_tile, _round_up(pl.cdiv(B, 2), 8))
    B_pad = max(_round_up(B, TB), 2 * TB)

    pad_t = T_pad - T
    text_col = jnp.pad(text, (0, pad_t)).reshape(T_pad, 1)                        # (T_pad, 1)
    bag_row = jnp.pad(bag_id, (0, pad_t), constant_values=-1).reshape(1, T_pad)   # (1, T_pad)
    w_row = jnp.pad(inv_len, (0, pad_t)).reshape(1, T_pad)                        # (1, T_pad)

    # VMEM budget derived from the actual buffers (default double-buffering),
    # capped below v7x's 64 MiB physical per-core VMEM.
    vmem_bytes = 4 * (
        2 * (V * E + E * C_pad + C_pad)   # emb / W^T / bias (grid-invariant)
        + 2 * 3 * TOK                     # token id / bag id / weight chunks
        + 2 * TB * C_pad                  # output tile
        + TB * V                          # counts scratch
    )
    vmem_limit = int(min(max(2 * vmem_bytes, 8 << 20), 48 << 20))

    grid_spec = pltpu.PrefetchScalarGridSpec(
        num_scalar_prefetch=0,
        grid=(B_pad // TB, T_pad // TOK),      # (bag tiles, token chunks)
        in_specs=[
            pl.BlockSpec((TOK, 1), lambda b, t: (t, 0)),      # token ids (column)
            pl.BlockSpec((1, TOK), lambda b, t: (0, t)),      # per-token bag id (row)
            pl.BlockSpec((1, TOK), lambda b, t: (0, t)),      # per-token 1/|bag| (row)
            pl.BlockSpec((V, E), lambda b, t: (0, 0)),        # embedding table
            pl.BlockSpec((E, C_pad), lambda b, t: (0, 0)),    # fc weight^T (padded)
            pl.BlockSpec((1, C_pad), lambda b, t: (0, 0)),    # fc bias (padded)
        ],
        out_specs=pl.BlockSpec((TB, C_pad), lambda b, t: (b, 0)),
        scratch_shapes=[pltpu.VMEM((TB, V), jnp.float32)],
    )

    out = pl.pallas_call(
        _embedding_bag_fc_kernel,
        out_shape=jax.ShapeDtypeStruct((B_pad, C_pad), jnp.float32),
        grid_spec=grid_spec,
        compiler_params=pltpu.CompilerParams(
            dimension_semantics=("parallel", "arbitrary"),
            vmem_limit_bytes=vmem_limit,
        ),
    )(text_col, bag_row, w_row, emb, w_t, bias)

    return out[:B, :num_class]


def reference_forward(text, offsets, emb_table, fc_w, fc_b):
    """Pure-JAX reference of EmbeddingBag(mean) + Linear (Python-level slicing)."""
    T = text.shape[0]
    B = offsets.shape[0]
    offs_ext = list(jnp.asarray(offsets).tolist()) + [T]
    bags = []
    for i in range(B):
        s, e = offs_ext[i], offs_ext[i + 1]
        if e > s:
            bags.append(emb_table[text[s:e]].mean(axis=0))
        else:
            bags.append(jnp.zeros((emb_table.shape[1],), jnp.float32))
    embedded = jnp.stack(bags)
    return embedded @ fc_w.T + fc_b


if __name__ == "__main__":
    # Small shapes consistent with the module:
    vocab_size, embed_dim, num_class = 32, 32, 4
    num_bags, total_tokens = 2, 8

    key = jax.random.PRNGKey(0)
    k_emb, k_w, k_text = jax.random.split(key, 3)

    # Deterministic parameter init mirroring init_weights(): uniform(-0.5, 0.5), bias = 0.
    initrange = 0.5
    emb_table = jax.random.uniform(
        k_emb, (vocab_size, embed_dim), jnp.float32, -initrange, initrange
    )
    fc_w = jax.random.uniform(
        k_w, (num_class, embed_dim), jnp.float32, -initrange, initrange
    )
    fc_b = jnp.zeros((num_class,), jnp.float32)

    # Example inputs: flat token ids + bag offsets (bag0 = tokens 0..4, bag1 = 5..7).
    text = jax.random.randint(k_text, (total_tokens,), 0, vocab_size, dtype=jnp.int32)
    offsets = jnp.array([0, 5], dtype=jnp.int32)

    params = prepare_params(emb_table, fc_w, fc_b)
    out = text_classification_forward(text, offsets, params)
    out = jax.block_until_ready(out)

    ref = reference_forward(text, offsets, emb_table, fc_w, fc_b)
    assert out.shape == (num_bags, num_class)
    assert jnp.allclose(out, ref, atol=1e-5, rtol=1e-5), (out, ref)

    print("KERNEL_OK")
</pallas_src>

<mosaic_0001>
module attributes {stable_mosaic.version = 11 : i64} {
  func.func @_embedding_bag_fc_kernel(%arg0: i32, %arg1: i32, %arg2: memref<128x1xi32, #tpu.memory_space<vmem>>, %arg3: memref<1x128xi32, #tpu.memory_space<vmem>>, %arg4: memref<1x128xf32, #tpu.memory_space<vmem>>, %arg5: memref<32x32xf32, #tpu.memory_space<vmem>>, %arg6: memref<32x128xf32, #tpu.memory_space<vmem>>, %arg7: memref<1x128xf32, #tpu.memory_space<vmem>>, %arg8: memref<8x128xf32, #tpu.memory_space<vmem>>, %arg9: memref<8x32xf32, #tpu.memory_space<vmem>>) attributes {dimension_semantics = [#tpu.dimension_semantics<parallel>, #tpu.dimension_semantics<arbitrary>], iteration_bounds = array<i64: 2, 1>, scalar_prefetch = 0 : i64, scratch_operands = 1 : i64, tpu.core_type = #tpu.core_type<tc>, window_params = [{transform_indices = @transform_0, window_bounds = array<i64: 128, 1>}, {transform_indices = @transform_1, window_bounds = array<i64: 1, 128>}, {transform_indices = @transform_2, window_bounds = array<i64: 1, 128>}, {pipeline_mode = #tpu.pipeline_mode<synchronous>, transform_indices = @transform_3, window_bounds = array<i64: 32, 32>}, {pipeline_mode = #tpu.pipeline_mode<synchronous>, transform_indices = @transform_4, window_bounds = array<i64: 32, 128>}, {pipeline_mode = #tpu.pipeline_mode<synchronous>, transform_indices = @transform_5, window_bounds = array<i64: 1, 128>}, {transform_indices = @transform_6, window_bounds = array<i64: 8, 128>}]} {
    %c0_i32 = arith.constant 0 : i32
    %0 = arith.cmpi eq, %arg1, %c0_i32 : i32
    %1 = arith.extui %0 : i1 to i32
    %c0_i32_0 = arith.constant 0 : i32
    %2 = arith.cmpi ne, %1, %c0_i32_0 : i32
    scf.if %2 {
      %cst_13 = arith.constant 0.000000e+00 : f32
      %28 = vector.broadcast %cst_13 : f32 to vector<8x32xf32>
      %c0_14 = arith.constant 0 : index
      %c0_15 = arith.constant 0 : index
      %29 = vector.load %arg9[%c0_14, %c0_15] : memref<8x32xf32, #tpu.memory_space<vmem>>, vector<8x32xf32>
      tpu.vector_store %arg9[%c0_14, %c0_15], %28 {strides = array<i32>} : memref<8x32xf32, #tpu.memory_space<vmem>>, vector<8x32xf32>,
    } else {
    }
    %3 = tpu.iota {dimensions = array<i32: 0>} : vector<8x128xi32>
    %c8_i32 = arith.constant 8 : i32
    %4 = arith.muli %arg0, %c8_i32 : i32
    %5 = vector.broadcast %4 : i32 to vector<8x128xi32>
    %6 = arith.addi %3, %5 : vector<8x128xi32>
    %c0 = arith.constant 0 : index
    %c0_1 = arith.constant 0 : index
    %7 = vector.load %arg3[%c0, %c0_1] : memref<1x128xi32, #tpu.memory_space<vmem>>, vector<1x128xi32>
    %8 = vector.broadcast %7 : vector<1x128xi32> to vector<8x128xi32>
    %9 = arith.cmpi eq, %8, %6 : vector<8x128xi32>
    %c0_2 = arith.constant 0 : index
    %c0_3 = arith.constant 0 : index
    %10 = vector.load %arg4[%c0_2, %c0_3] : memref<1x128xf32, #tpu.memory_space<vmem>>, vector<1x128xf32>
    %cst = arith.constant 0.000000e+00 : f32
    %11 = vector.shape_cast %10 : vector<1x128xf32> to vector<1x128xf32>
    %12 = vector.broadcast %11 : vector<1x128xf32> to vector<8x128xf32>
    %13 = vector.broadcast %cst : f32 to vector<8x128xf32>
    %14 = arith.select %9, %12, %13 : vector<8x128xi1>, vector<8x128xf32>
    %15 = tpu.iota {dimensions = array<i32: 1>} : vector<128x32xi32>
    %c0_4 = arith.constant 0 : index
    %c0_5 = arith.constant 0 : index
    %16 = vector.load %arg2[%c0_4, %c0_5] : memref<128x1xi32, #tpu.memory_space<vmem>>, vector<128x1xi32>
    %17 = vector.broadcast %16 : vector<128x1xi32> to vector<128x32xi32>
    %18 = arith.cmpi eq, %17, %15 : vector<128x32xi32>
    %19 = arith.extui %18 : vector<128x32xi1> to vector<128x32xi32>
    %20 = arith.sitofp %19 : vector<128x32xi32> to vector<128x32xf32>
    %c0_6 = arith.constant 0 : index
    %c0_7 = arith.constant 0 : index
    %21 = vector.load %arg9[%c0_6, %c0_7] : memref<8x32xf32, #tpu.memory_space<vmem>>, vector<8x32xf32>
    %cst_8 = arith.constant dense<0.000000e+00> : vector<8x32xf32>
    %22 = tpu.matmul %14, %20, %cst_8 {dimension_numbers = #tpu.dot_dimension_numbers<[1], [0], [0], [1], [0, 0, 1, 1], [], []>} : vector<8x128xf32>, vector<128x32xf32>, vector<8x32xf32> -> vector<8x32xf32>
    %23 = arith.addf %21, %22 : vector<8x32xf32>
    %c0_9 = arith.constant 0 : index
    %c0_10 = arith.constant 0 : index
    %24 = vector.load %arg9[%c0_9, %c0_10] : memref<8x32xf32, #tpu.memory_space<vmem>>, vector<8x32xf32>
    tpu.vector_store %arg9[%c0_9, %c0_10], %23 {strides = array<i32>} : memref<8x32xf32, #tpu.memory_space<vmem>>, vector<8x32xf32>,
    %c0_i32_11 = arith.constant 0 : i32
    %25 = arith.cmpi eq, %arg1, %c0_i32_11 : i32
    %26 = arith.extui %25 : i1 to i32
    %c0_i32_12 = arith.constant 0 : i32
    %27 = arith.cmpi ne, %26, %c0_i32_12 : i32
    scf.if %27 {
      %c0_13 = arith.constant 0 : index
      %c0_14 = arith.constant 0 : index
      %28 = vector.load %arg9[%c0_13, %c0_14] : memref<8x32xf32, #tpu.memory_space<vmem>>, vector<8x32xf32>
      %c0_15 = arith.constant 0 : index
      %c0_16 = arith.constant 0 : index
      %29 = vector.load %arg5[%c0_15, %c0_16] : memref<32x32xf32, #tpu.memory_space<vmem>>, vector<32x32xf32>
      %cst_17 = arith.constant dense<0.000000e+00> : vector<8x32xf32>
      %30 = tpu.matmul %28, %29, %cst_17 {dimension_numbers = #tpu.dot_dimension_numbers<[1], [0], [0], [1], [0, 0, 1, 1], [], []>} : vector<8x32xf32>, vector<32x32xf32>, vector<8x32xf32> -> vector<8x32xf32>
      %c0_18 = arith.constant 0 : index
      %c0_19 = arith.constant 0 : index
      %31 = vector.load %arg6[%c0_18, %c0_19] : memref<32x128xf32, #tpu.memory_space<vmem>>, vector<32x128xf32>
      %cst_20 = arith.constant dense<0.000000e+00> : vector<8x128xf32>
      %32 = tpu.matmul %30, %31, %cst_20 {dimension_numbers = #tpu.dot_dimension_numbers<[1], [0], [0], [1], [0, 0, 1, 1], [], []>} : vector<8x32xf32>, vector<32x128xf32>, vector<8x128xf32> -> vector<8x128xf32>
      %c0_21 = arith.constant 0 : index
      %c0_22 = arith.constant 0 : index
      %33 = vector.load %arg7[%c0_21, %c0_22] : memref<1x128xf32, #tpu.memory_space<vmem>>, vector<1x128xf32>
      %34 = vector.broadcast %33 : vector<1x128xf32> to vector<8x128xf32>
      %35 = arith.addf %32, %34 : vector<8x128xf32>
      %c0_23 = arith.constant 0 : index
      %c0_24 = arith.constant 0 : index
      %36 = vector.load %arg8[%c0_23, %c0_24] : memref<8x128xf32, #tpu.memory_space<vmem>>, vector<8x128xf32>
      tpu.vector_store %arg8[%c0_23, %c0_24], %35 {strides = array<i32>} : memref<8x128xf32, #tpu.memory_space<vmem>>, vector<8x128xf32>,
    } else {
    }
    return
  }
  func.func @transform_0(%arg0: i32, %arg1: i32) -> (i32, i32) {
    %c0_i32 = arith.constant 0 : i32
    %c0_i32_0 = arith.constant 0 : i32
    return %arg1, %c0_i32 : i32, i32
  }
  func.func @transform_1(%arg0: i32, %arg1: i32) -> (i32, i32) {
    %c0_i32 = arith.constant 0 : i32
    %c0_i32_0 = arith.constant 0 : i32
    return %c0_i32, %arg1 : i32, i32
  }
  func.func @transform_2(%arg0: i32, %arg1: i32) -> (i32, i32) {
    %c0_i32 = arith.constant 0 : i32
    %c0_i32_0 = arith.constant 0 : i32
    return %c0_i32, %arg1 : i32, i32
  }
  func.func @transform_3(%arg0: i32, %arg1: i32) -> (i32, i32) {
    %c0_i32 = arith.constant 0 : i32
    %c0_i32_0 = arith.constant 0 : i32
    %c0_i32_1 = arith.constant 0 : i32
    return %c0_i32, %c0_i32_0 : i32, i32
  }
  func.func @transform_4(%arg0: i32, %arg1: i32) -> (i32, i32) {
    %c0_i32 = arith.constant 0 : i32
    %c0_i32_0 = arith.constant 0 : i32
    %c0_i32_1 = arith.constant 0 : i32
    return %c0_i32, %c0_i32_0 : i32, i32
  }
  func.func @transform_5(%arg0: i32, %arg1: i32) -> (i32, i32) {
    %c0_i32 = arith.constant 0 : i32
    %c0_i32_0 = arith.constant 0 : i32
    %c0_i32_1 = arith.constant 0 : i32
    return %c0_i32, %c0_i32_0 : i32, i32
  }
  func.func @transform_6(%arg0: i32, %arg1: i32) -> (i32, i32) {
    %c0_i32 = arith.constant 0 : i32
    %c0_i32_0 = arith.constant 0 : i32
    return %arg0, %c0_i32 : i32, i32
  }
}

</mosaic_0001>

<llo_original>
// kernel: tpu_custom_call.1
$region0: #{tpu_custom_call.1}
  #allocation0 [shape = 'u32[]', space=smem, size = 0x4, offset = 0x4, fixed_abs, tag = 'smem constant byte address 0x4 - core index']
  #allocation1 [shape = 'u32[72,128]{1,0:T(1,128)}', space=vmem, size = 0x9000, scoped, tag = 'internal scratch']
  #allocation2 [shape = 'f32[8,32]{1,0:T(8,128)}', space=vmem, size = 0x1000, scoped, tag = 'scratch operand']
  %s0 = inlined_call_operand.vmem [shape: s32[128,1], index: 0, kind: input, shape index: {}]
  %s1 = inlined_call_operand.vmem [shape: s32[1,128], index: 1, kind: input, shape index: {}]
  %s2 = inlined_call_operand.vmem [shape: f32[1,128], index: 2, kind: input, shape index: {}]
  %s3 = inlined_call_operand.vmem [shape: f32[32,32], index: 3, kind: input, shape index: {}]
  %s4 = inlined_call_operand.vmem [shape: f32[32,128], index: 4, kind: input, shape index: {}]
  %s5 = inlined_call_operand.vmem [shape: f32[1,128], index: 5, kind: input, shape index: {}]
  %s6 = inlined_call_operand.hbm [shape: f32[16,128], index: 6, kind: output, shape index: {}]
  %s7 = sld [smem:[#allocation0]]
  $region65: #{tpu_custom_call.1} parent=0
    _
  %s9 = ssub.s32 1, %s7
  %s10 = scalar_select 0, %s9, %s7
  $region1: #{tpu_custom_call.1} parent=0
    #allocation3 [shape = 'u8[8192]{0}', space=vmem, size = 0x2000, scoped, tag = 'output window, operand 0']
    #allocation4 [shape = 's32[2]{0}', space=sflag, size = 0x8, scoped, tag = 'scoped memory for tpu_custom_call.1']
    %11 = vsyncpa [#allocation4], 0
    %s12 = scalar_lea.sflag [#allocation4], 1
    %13 = vsyncpa %s12, 0
    loop: start=0, step=1, limit=4
    $region2: #{tpu_custom_call.1} parent=1 // loop_pre_header
      _
    $region3: #{tpu_custom_call.1} parent=1 // loop_header
      %s15 = sphi 0, %s19
      %p16 = scmp.ge.s32.totalorder %s15, 4
      %s22 = sphi 0, %s34
      %s23 = sphi 0, %s30
      %s24 = sphi 0, %s22
      %s25 = sphi 0, %s23
      %s26 = sphi 0, %s24
      %s27 = sphi 0, %s25
      %s37 = sphi 0, %s39
      %s40 = sphi 0, %s37
      %s41 = sphi 0, %s40
      %s57 = sphi 0, %s41
      %s63 = sphi 0, %s65
      %s66 = sphi 0, %s63
      %s67 = sphi 0, %s66
      %s83 = sphi 0, %s67
      %s89 = sphi 0, %s91
      %s92 = sphi 0, %s89
      %s93 = sphi 0, %s92
      %s109 = sphi 0, %s93
      %s113 = sphi 0, %s113
      %s115 = sphi 0, %s113
      %s116 = sphi 0, %s115
      %s130 = sphi 0, %s116
      %s134 = sphi 0, %s134
      %s136 = sphi 0, %s134
      %s137 = sphi 0, %s136
      %s151 = sphi 0, %s137
      %s155 = sphi 0, %s155
      %s157 = sphi 0, %s155
      %s158 = sphi 0, %s157
      %s172 = sphi 0, %s158
      %s178 = sphi 0, %s180
      %s181 = sphi 0, %s178
      %s182 = sphi 0, %s181
      %s198 = sphi 0, %s182
    $region4: #{tpu_custom_call.1} parent=1 // loop_header_branch
      %18 = sbr.rel (%p16) target = $region8
    $region5: #{tpu_custom_call.1} parent=1 // loop_body
      %s20 = ssub.s32 %s15, 1
      %s21 = ssub.s32 %s15, 2
      %s28 = sadd.s32 1, %s23
      %p29 = scmp.ge.s32.totalorder %s28, 1
      %s30 = scalar_select %p29, 0, %s28
      %s31 = sadd.s32 1, %s22
      %s32 = scalar_select %p29, %s31, %s22
      %p33 = scmp.ge.s32.totalorder %s32, 2
      %s34 = scalar_select %p33, 0, %s32
      %s35 = ssub.s32 %s23, %s30
      %p36 = scmp.eq.s32.totalorder %s35, 0
      %s38 = sadd.s32 %s37, 1
      %s39 = scalar_select %p36, %s37, %s38
      %p42 = pneg %p36
      %p43 = scmp.eq.s32.totalorder %s15, 1
      %p44 = por %p42, %p43
      %p45 = scmp.ne.s32.totalorder %s37, %s40
      %p46 = scmp.eq.s32.totalorder %s15, 0
      %p47 = por %p45, %p46
      %p48 = scmp.ne.s32.totalorder %s37, %s40
      %p49 = scmp.eq.s32.totalorder %s20, 1
      %p50 = por %p48, %p49
      %p51 = scmp.ne.s32.totalorder %s40, %s41
      %p52 = scmp.eq.s32.totalorder %s20, 0
      %p53 = por %p51, %p52
      %p54 = scmp.ne.s32.totalorder %s40, %s41
      %p55 = scmp.eq.s32.totalorder %s21, 1
      %p56 = por %p54, %p55
      %p58 = scmp.ne.s32.totalorder %s41, %s57
      %p59 = scmp.eq.s32.totalorder %s21, 0
      %p60 = por %p58, %p59
      %s61 = ssub.s32 %s23, %s30
      %p62 = scmp.eq.s32.totalorder %s61, 0
      %s64 = sadd.s32 %s63, 1
      %s65 = scalar_select %p62, %s63, %s64
      %p68 = pneg %p62
      %p69 = scmp.eq.s32.totalorder %s15, 1
      %p70 = por %p68, %p69
      %p71 = scmp.ne.s32.totalorder %s63, %s66
      %p72 = scmp.eq.s32.totalorder %s15, 0
      %p73 = por %p71, %p72
      %p74 = scmp.ne.s32.totalorder %s63, %s66
      %p75 = scmp.eq.s32.totalorder %s20, 1
      %p76 = por %p74, %p75
      %p77 = scmp.ne.s32.totalorder %s66, %s67
      %p78 = scmp.eq.s32.totalorder %s20, 0
      %p79 = por %p77, %p78
      %p80 = scmp.ne.s32.totalorder %s66, %s67
      %p81 = scmp.eq.s32.totalorder %s21, 1
      %p82 = por %p80, %p81
      %p84 = scmp.ne.s32.totalorder %s67, %s83
      %p85 = scmp.eq.s32.totalorder %s21, 0
      %p86 = por %p84, %p85
      %s87 = ssub.s32 %s23, %s30
      %p88 = scmp.eq.s32.totalorder %s87, 0
      %s90 = sadd.s32 %s89, 1
      %s91 = scalar_select %p88, %s89, %s90
      %p94 = pneg %p88
      %p95 = scmp.eq.s32.totalorder %s15, 1
      %p96 = por %p94, %p95
      %p97 = scmp.ne.s32.totalorder %s89, %s92
      %p98 = scmp.eq.s32.totalorder %s15, 0
      %p99 = por %p97, %p98
      %p100 = scmp.ne.s32.totalorder %s89, %s92
      %p101 = scmp.eq.s32.totalorder %s20, 1
      %p102 = por %p100, %p101
      %p103 = scmp.ne.s32.totalorder %s92, %s93
      %p104 = scmp.eq.s32.totalorder %s20, 0
      %p105 = por %p103, %p104
      %p106 = scmp.ne.s32.totalorder %s92, %s93
      %p107 = scmp.eq.s32.totalorder %s21, 1
      %p108 = por %p106, %p107
      %p110 = scmp.ne.s32.totalorder %s93, %s109
      %p111 = scmp.eq.s32.totalorder %s21, 0
      %p112 = por %p110, %p111
      %s114 = sadd.s32 %s113, 1
      %p117 = scmp.eq.s32.totalorder %s15, 1
      %p118 = scmp.ne.s32.totalorder %s113, %s115
      %p119 = scmp.eq.s32.totalorder %s15, 0
      %p120 = por %p118, %p119
      %p121 = scmp.ne.s32.totalorder %s113, %s115
      %p122 = scmp.eq.s32.totalorder %s20, 1
      %p123 = por %p121, %p122
      %p124 = scmp.ne.s32.totalorder %s115, %s116
      %p125 = scmp.eq.s32.totalorder %s20, 0
      %p126 = por %p124, %p125
      %p127 = scmp.ne.s32.totalorder %s115, %s116
      %p128 = scmp.eq.s32.totalorder %s21, 1
      %p129 = por %p127, %p128
      %p131 = scmp.ne.s32.totalorder %s116, %s130
      %p132 = scmp.eq.s32.totalorder %s21, 0
      %p133 = por %p131, %p132
      %s135 = sadd.s32 %s134, 1
      %p138 = scmp.eq.s32.totalorder %s15, 1
      %p139 = scmp.ne.s32.totalorder %s134, %s136
      %p140 = scmp.eq.s32.totalorder %s15, 0
      %p141 = por %p139, %p140
      %p142 = scmp.ne.s32.totalorder %s134, %s136
      %p143 = scmp.eq.s32.totalorder %s20, 1
      %p144 = por %p142, %p143
      %p145 = scmp.ne.s32.totalorder %s136, %s137
      %p146 = scmp.eq.s32.totalorder %s20, 0
      %p147 = por %p145, %p146
      %p148 = scmp.ne.s32.totalorder %s136, %s137
      %p149 = scmp.eq.s32.totalorder %s21, 1
      %p150 = por %p148, %p149
      %p152 = scmp.ne.s32.totalorder %s137, %s151
      %p153 = scmp.eq.s32.totalorder %s21, 0
      %p154 = por %p152, %p153
      %s156 = sadd.s32 %s155, 1
      %p159 = scmp.eq.s32.totalorder %s15, 1
      %p160 = scmp.ne.s32.totalorder %s155, %s157
      %p161 = scmp.eq.s32.totalorder %s15, 0
      %p162 = por %p160, %p161
      %p163 = scmp.ne.s32.totalorder %s155, %s157
      %p164 = scmp.eq.s32.totalorder %s20, 1
      %p165 = por %p163, %p164
      %p166 = scmp.ne.s32.totalorder %s157, %s158
      %p167 = scmp.eq.s32.totalorder %s20, 0
      %p168 = por %p166, %p167
      %p169 = scmp.ne.s32.totalorder %s157, %s158
      %p170 = scmp.eq.s32.totalorder %s21, 1
      %p171 = por %p169, %p170
      %p173 = scmp.ne.s32.totalorder %s158, %s172
      %p174 = scmp.eq.s32.totalorder %s21, 0
      %p175 = por %p173, %p174
      %s176 = ssub.s32 %s22, %s34
      %p177 = scmp.eq.s32.totalorder %s176, 0
      %s179 = sadd.s32 %s178, 1
      %s180 = scalar_select %p177, %s178, %s179
      %p183 = pneg %p177
      %p184 = scmp.eq.s32.totalorder %s15, 1
      %p185 = por %p183, %p184
      %p186 = scmp.ne.s32.totalorder %s178, %s181
      %p187 = scmp.eq.s32.totalorder %s15, 0
      %p188 = por %p186, %p187
      %p189 = scmp.ne.s32.totalorder %s178, %s181
      %p190 = scmp.eq.s32.totalorder %s20, 1
      %p191 = por %p189, %p190
      %p192 = scmp.ne.s32.totalorder %s181, %s182
      %p193 = scmp.eq.s32.totalorder %s20, 0
      %p194 = por %p192, %p193
      %p195 = scmp.ne.s32.totalorder %s181, %s182
      %p196 = scmp.eq.s32.totalorder %s21, 1
      %p197 = por %p195, %p196
      %p199 = scmp.ne.s32.totalorder %s182, %s198
      %p200 = scmp.eq.s32.totalorder %s21, 0
      %p201 = por %p199, %p200
      %p202 = scmp.le.s32.totalorder 1, %s15
      %p203 = scmp.lt.s32.totalorder %s15, 3
      %p204 = pnand %p202, %p203
      %p205 = pneg %p204
      // Predicated region
      $region9: #{tpu_custom_call.1} parent=5 // pred_check
        _
      $region10: #{tpu_custom_call.1} parent=5 // pred_check_branch
        %207 = sbr.rel (%p204) target = $region12
      $region11: #{tpu_custom_call.1} parent=5 // pred_region
        %s208 = ssub.s32 %s15, 1
        // Predicated region
        $region13: #{tpu_custom_call.1} parent=11 // pred_check
          %p209 = pneg %p53
        $region14: #{tpu_custom_call.1} parent=11 // pred_check_branch
          %211 = sbr.rel (%p209) target = $region16
        $region15: #{tpu_custom_call.1} parent=11 // pred_region
          %s212 = smul.u32 16, %s25
          %p213 = scmp.lt.s32.totalorder %s212, 15
          %s214 = scalar_select %p213, %s212, 15
          %s215 = smul.addr %s214, 8
          %s216 = scalar_lea.vmem %s0, %s215
          %s217 = smul.u32 16, %s25
        $region16: #{tpu_custom_call.1} parent=11 // pred_fallthru
          _
        // Predicated region
        $region17: #{tpu_custom_call.1} parent=11 // pred_check
          %p218 = pneg %p79
        $region18: #{tpu_custom_call.1} parent=11 // pred_check_branch
          %220 = sbr.rel (%p218) target = $region20
        $region19: #{tpu_custom_call.1} parent=11 // pred_region
          %p221 = scmp.lt.s32.totalorder %s25, 0
          %s222 = scalar_select %p221, %s25, 0
          %s223 = scalar_lea.vmem %s1, %s222
        $region20: #{tpu_custom_call.1} parent=11 // pred_fallthru
          _
        // Predicated region
        $region21: #{tpu_custom_call.1} parent=11 // pred_check
          %p224 = pneg %p105
        $region22: #{tpu_custom_call.1} parent=11 // pred_check_branch
          %226 = sbr.rel (%p224) target = $region24
        $region23: #{tpu_custom_call.1} parent=11 // pred_region
          %p227 = scmp.lt.s32.totalorder %s25, 0
          %s228 = scalar_select %p227, %s25, 0
          %s229 = scalar_lea.vmem %s2, %s228
        $region24: #{tpu_custom_call.1} parent=11 // pred_fallthru
          _
        // Predicated region
        $region25: #{tpu_custom_call.1} parent=11 // pred_check
          %p230 = pneg %p126
        $region26: #{tpu_custom_call.1} parent=11 // pred_check_branch
          %232 = sbr.rel (%p230) target = $region28
        $region27: #{tpu_custom_call.1} parent=11 // pred_region
          _
        $region28: #{tpu_custom_call.1} parent=11 // pred_fallthru
          _
        // Predicated region
        $region29: #{tpu_custom_call.1} parent=11 // pred_check
          %p233 = pneg %p147
        $region30: #{tpu_custom_call.1} parent=11 // pred_check_branch
          %235 = sbr.rel (%p233) target = $region32
        $region31: #{tpu_custom_call.1} parent=11 // pred_region
          _
        $region32: #{tpu_custom_call.1} parent=11 // pred_fallthru
          _
        // Predicated region
        $region33: #{tpu_custom_call.1} parent=11 // pred_check
          %p236 = pneg %p168
        $region34: #{tpu_custom_call.1} parent=11 // pred_check_branch
          %238 = sbr.rel (%p236) target = $region36
        $region35: #{tpu_custom_call.1} parent=11 // pred_region
          _
        $region36: #{tpu_custom_call.1} parent=11 // pred_fallthru
          _
      $region12: #{tpu_custom_call.1} parent=5 // pred_fallthru
        _
      %p239 = scmp.lt.s32.totalorder %s15, 2
      // Predicated region
      $region37: #{tpu_custom_call.1} parent=5 // pred_check
        %p240 = pneg %p239
      $region38: #{tpu_custom_call.1} parent=5 // pred_check_branch
        %242 = sbr.rel (%p240) target = $region40
      $region39: #{tpu_custom_call.1} parent=5 // pred_region
        _
      $region40: #{tpu_custom_call.1} parent=5 // pred_fallthru
        _
      %p243 = scmp.le.s32.totalorder 1, %s15
      %p244 = scmp.lt.s32.totalorder %s15, 3
      %p245 = pnand %p243, %p244
      %p246 = pneg %p245
      // Predicated region
      $region41: #{tpu_custom_call.1} parent=5 // pred_check
        _
      $region42: #{tpu_custom_call.1} parent=5 // pred_check_branch
        %248 = sbr.rel (%p245) target = $region44
      $region43: #{tpu_custom_call.1} parent=5 // pred_region
        %s249 = ssub.s32 %s15, 1
        %s250 = smul.u32 16, %s25
        %p251 = scmp.lt.s32.totalorder %s250, 15
        %s252 = scalar_select %p251, %s250, 15
        %s253 = smul.addr %s252, 8
        %s254 = scalar_lea.vmem %s0, %s253
        %p255 = pneg %p53
        %p256 = pneg %p50
        %p257 = scmp.lt.s32.totalorder %s25, 0
        %s258 = scalar_select %p257, %s25, 0
        %s259 = scalar_lea.vmem %s1, %s258
        %p260 = pneg %p79
        %p261 = pneg %p76
        %p262 = scmp.lt.s32.totalorder %s25, 0
        %s263 = scalar_select %p262, %s25, 0
        %s264 = scalar_lea.vmem %s2, %s263
        %p265 = pneg %p105
        %p266 = pneg %p102
        %p267 = pneg %p126
        %p268 = pneg %p123
        %p269 = pneg %p147
        %p270 = pneg %p144
        %p271 = pneg %p168
        %p272 = pneg %p165
        %p273 = pneg %p194
        %p274 = pneg %p191
        %s275 = sand.u32 %s181, 1
        %s276 = scalar_lea.sflag [#allocation4], %s275
        %s277 = sand.u32 %s181, 1
        %s278 = smul.addr %s277, 8
        %s279 = scalar_lea.vmem [#allocation3], %s278
        %s280 = smul.u32 16, %s25
        %p281 = scmp.lt.s32.totalorder %s280, 15
        %s282 = scalar_select %p281, %s280, 15
        %s283 = smul.addr %s282, 8
        %s284 = scalar_lea.vmem %s0, %s283
        %s285 = smul.u32 16, %s25
        %p286 = scmp.lt.s32.totalorder %s25, 0
        %s287 = scalar_select %p286, %s25, 0
        %s288 = scalar_lea.vmem %s1, %s287
        %p289 = scmp.lt.s32.totalorder %s25, 0
        %s290 = scalar_select %p289, %s25, 0
        %s291 = scalar_lea.vmem %s2, %s290
        %p292 = scmp.eq.s32.totalorder %s25, 0
        // Predicated region
        $region45: #{tpu_custom_call.1} parent=43 // pred_check
          %p293 = pneg %p292
        $region46: #{tpu_custom_call.1} parent=43 // pred_check_branch
          %295 = sbr.rel (%p293) target = $region48
        $region47: #{tpu_custom_call.1} parent=43 // pred_region
          %vm296 = vcmask 261120
          %297 = vst.msk [vmem:[#allocation2] sm:$0xff] %vm296, 0.0
        $region48: #{tpu_custom_call.1} parent=43 // pred_fallthru
          _
        %v298 = vlaneseq
        %v299 = vshrl.u32 %v298, 7
        %s300 = smul.u32 %s24, 8
        %v301 = vstv %s300
        %v302 = vadd.s32 %v299, %v301
        %v303 = vld [vmem:[%s288] sm:$0x1]
        %v304 = vperm.slane %v303, 0
        %vm305 = vcmp.eq.s32.totalorder %v304, %v302
        %v306 = vld [vmem:[%s291] sm:$0x1]
        %v308 = vperm.slane %v306, 0
        %v310 = vsel %vm305, %v308, 0.0
        %v311 = vlaneseq
        %v312 = vand.u32 %v311, 127
        %v313 = vld [vmem:[%s284] sm:$0xff]
        %v314 = vld [vmem:[%s284 + $0x8] sm:$0xff]
        %v315 = vld [vmem:[%s284 + $0x10] sm:$0xff]
        %v316 = vld [vmem:[%s284 + $0x18] sm:$0xff]
        %v317 = vld [vmem:[%s284 + $0x20] sm:$0xff]
        %v318 = vld [vmem:[%s284 + $0x28] sm:$0xff]
        %v319 = vld [vmem:[%s284 + $0x30] sm:$0xff]
        %v320 = vld [vmem:[%s284 + $0x38] sm:$0xff]
        %v321 = vld [vmem:[%s284 + $0x40] sm:$0xff]
        %v322 = vld [vmem:[%s284 + $0x48] sm:$0xff]
        %v323 = vld [vmem:[%s284 + $0x50] sm:$0xff]
        %v324 = vld [vmem:[%s284 + $0x58] sm:$0xff]
        %v325 = vld [vmem:[%s284 + $0x60] sm:$0xff]
        %v326 = vld [vmem:[%s284 + $0x68] sm:$0xff]
        %v327 = vld [vmem:[%s284 + $0x70] sm:$0xff]
        %v328 = vld [vmem:[%s284 + $0x78] sm:$0xff]
        %329 = vset.pattern.permute.xlu0 0
        %330 = vperm.xlu0 %329, %v313
        %v331 = vpop.permute.xlu0 %330
        %332 = vset.pattern.permute.xlu0 0
        %333 = vperm.xlu0 %332, %v314
        %v334 = vpop.permute.xlu0 %333
        %335 = vset.pattern.permute.xlu0 0
        %336 = vperm.xlu0 %335, %v315
        %v337 = vpop.permute.xlu0 %336
        %338 = vset.pattern.permute.xlu0 0
        %339 = vperm.xlu0 %338, %v316
        %v340 = vpop.permute.xlu0 %339
        %341 = vset.pattern.permute.xlu0 0
        %342 = vperm.xlu0 %341, %v317
        %v343 = vpop.permute.xlu0 %342
        %344 = vset.pattern.permute.xlu0 0
        %345 = vperm.xlu0 %344, %v318
        %v346 = vpop.permute.xlu0 %345
        %347 = vset.pattern.permute.xlu0 0
        %348 = vperm.xlu0 %347, %v319
        %v349 = vpop.permute.xlu0 %348
        %350 = vset.pattern.permute.xlu0 0
        %351 = vperm.xlu0 %350, %v320
        %v352 = vpop.permute.xlu0 %351
        %353 = vset.pattern.permute.xlu0 0
        %354 = vperm.xlu0 %353, %v321
        %v355 = vpop.permute.xlu0 %354
        %356 = vset.pattern.permute.xlu0 0
        %357 = vperm.xlu0 %356, %v322
        %v358 = vpop.permute.xlu0 %357
        %359 = vset.pattern.permute.xlu0 0
        %360 = vperm.xlu0 %359, %v323
        %v361 = vpop.permute.xlu0 %360
        %362 = vset.pattern.permute.xlu0 0
        %363 = vperm.xlu0 %362, %v324
        %v364 = vpop.permute.xlu0 %363
        %365 = vset.pattern.permute.xlu0 0
        %366 = vperm.xlu0 %365, %v325
        %v367 = vpop.permute.xlu0 %366
        %368 = vset.pattern.permute.xlu0 0
        %369 = vperm.xlu0 %368, %v326
        %v370 = vpop.permute.xlu0 %369
        %371 = vset.pattern.permute.xlu0 0
        %372 = vperm.xlu0 %371, %v327
        %v373 = vpop.permute.xlu0 %372
        %374 = vset.pattern.permute.xlu0 0
        %375 = vperm.xlu0 %374, %v328
        %v376 = vpop.permute.xlu0 %375
        %vm377 = vcmp.eq.s32.totalorder %v331, %v312
        %vm378 = vcmp.eq.s32.totalorder %v334, %v312
        %vm379 = vcmp.eq.s32.totalorder %v337, %v312
        %vm380 = vcmp.eq.s32.totalorder %v340, %v312
        %vm381 = vcmp.eq.s32.totalorder %v343, %v312
        %vm382 = vcmp.eq.s32.totalorder %v346, %v312
        %vm383 = vcmp.eq.s32.totalorder %v349, %v312
        %vm384 = vcmp.eq.s32.totalorder %v352, %v312
        %vm385 = vcmp.eq.s32.totalorder %v355, %v312
        %vm386 = vcmp.eq.s32.totalorder %v358, %v312
        %vm387 = vcmp.eq.s32.totalorder %v361, %v312
        %vm388 = vcmp.eq.s32.totalorder %v364, %v312
        %vm389 = vcmp.eq.s32.totalorder %v367, %v312
        %vm390 = vcmp.eq.s32.totalorder %v370, %v312
        %vm391 = vcmp.eq.s32.totalorder %v373, %v312
        %vm392 = vcmp.eq.s32.totalorder %v376, %v312
        %v393 = vsel %vm377, 1, 0
        %v394 = vsel %vm378, 1, 0
        %v395 = vsel %vm379, 1, 0
        %v396 = vsel %vm380, 1, 0
        %v397 = vsel %vm381, 1, 0
        %v398 = vsel %vm382, 1, 0
        %v399 = vsel %vm383, 1, 0
        %v400 = vsel %vm384, 1, 0
        %v401 = vsel %vm385, 1, 0
        %v402 = vsel %vm386, 1, 0
        %v403 = vsel %vm387, 1, 0
        %v404 = vsel %vm388, 1, 0
        %v405 = vsel %vm389, 1, 0
        %v406 = vsel %vm390, 1, 0
        %v407 = vsel %vm391, 1, 0
        %v408 = vsel %vm392, 1, 0
        %v409 = vcvt.s32.f32 %v393
        %v410 = vcvt.s32.f32 %v394
        %v411 = vcvt.s32.f32 %v395
        %v412 = vcvt.s32.f32 %v396
        %v413 = vcvt.s32.f32 %v397
        %v414 = vcvt.s32.f32 %v398
        %v415 = vcvt.s32.f32 %v399
        %v416 = vcvt.s32.f32 %v400
        %v417 = vcvt.s32.f32 %v401
        %v418 = vcvt.s32.f32 %v402
        %v419 = vcvt.s32.f32 %v403
        %v420 = vcvt.s32.f32 %v404
        %v421 = vcvt.s32.f32 %v405
        %v422 = vcvt.s32.f32 %v406
        %v423 = vcvt.s32.f32 %v407
        %v424 = vcvt.s32.f32 %v408
        %v425 = vld [vmem:[#allocation2] sm:$0xff]
        %426 = vmatpush.msra.mxu0 %v424
        %427 = vmatpush.msra.mxu0 %v423
        %428 = vmatpush.msra.mxu0 %v422
        %429 = vmatpush.msra.mxu0 %v421
        %430 = vmatpush.msra.mxu0 %v420
        %431 = vmatpush.msra.mxu0 %v419
        %432 = vmatpush.msra.mxu0 %v418
        %433 = vmatpush.msra.mxu0 %v417
        %434 = vmatpush.msra.mxu0 %v416
        %435 = vmatpush.msra.mxu0 %v415
        %436 = vmatpush.msra.mxu0 %v414
        %437 = vmatpush.msra.mxu0 %v413
        %438 = vmatpush.msra.mxu0 %v412
        %439 = vmatpush.msra.mxu0 %v411
        %440 = vmatpush.msra.mxu0 %v410
        %441 = vmatpush.msra.mxu0 %v409
        %442 = vmatmul.f32.gmra.mxu0 %v310
        %v443 = vpop.f32.mrf.mxu0
        %v444 = vadd.f32 0.0, %v443
        %445 = vdwg.mxu0
        %v446 = vadd.f32 %v425, %v444
        %vm447 = vcmask 261120
        %448 = vst.msk [vmem:[#allocation2] sm:$0xff] %vm447, %v446
        // Predicated region
        $region49: #{tpu_custom_call.1} parent=43 // pred_check
          %p449 = pneg %p292
        $region50: #{tpu_custom_call.1} parent=43 // pred_check_branch
          %451 = sbr.rel (%p449) target = $region52
        $region51: #{tpu_custom_call.1} parent=43 // pred_region
          %v452 = vld [vmem:[#allocation2] sm:$0xff]
          %v453 = vld [vmem:[%s3] sm:$0xff]
          %v454 = vld [vmem:[%s3 + $0x8] sm:$0xff]
          %v455 = vld [vmem:[%s3 + $0x10] sm:$0xff]
          %v456 = vld [vmem:[%s3 + $0x18] sm:$0xff]
          %v458 = vsel %vm447, %v452, 0
          %460 = vmatpush.msra.mxu0 0.0
          %461 = vmatpush.msra.mxu0 0.0
          %462 = vmatpush.msra.mxu0 0.0
          %463 = vmatpush.msra.mxu0 0.0
          %464 = vmatpush.msra.mxu0 0.0
          %465 = vmatpush.msra.mxu0 0.0
          %466 = vmatpush.msra.mxu0 0.0
          %467 = vmatpush.msra.mxu0 0.0
          %468 = vmatpush.msra.mxu0 0.0
          %469 = vmatpush.msra.mxu0 0.0
          %470 = vmatpush.msra.mxu0 0.0
          %471 = vmatpush.msra.mxu0 0.0
          %472 = vmatpush.msra.mxu0 %v456
          %473 = vmatpush.msra.mxu0 %v455
          %474 = vmatpush.msra.mxu0 %v454
          %475 = vmatpush.msra.mxu0 %v453
          %476 = vmatmul.f32.gmra.mxu0 %v458
          %v477 = vpop.f32.mrf.mxu0
          %v478 = vadd.f32 0.0, %v477
          %479 = vdwg.mxu0
          %v480 = vld [vmem:[%s4] sm:$0xff]
          %v481 = vld [vmem:[%s4 + $0x8] sm:$0xff]
          %v482 = vld [vmem:[%s4 + $0x10] sm:$0xff]
          %v483 = vld [vmem:[%s4 + $0x18] sm:$0xff]
          %v484 = vld [vmem:[%s5] sm:$0x1]
          %v486 = vperm.slane %v484, 0
          %v489 = vsel %vm447, %v478, 0
          %491 = vmatpush.msra.mxu0 0.0
          %492 = vmatpush.msra.mxu0 0.0
          %493 = vmatpush.msra.mxu0 0.0
          %494 = vmatpush.msra.mxu0 0.0
          %495 = vmatpush.msra.mxu0 0.0
          %496 = vmatpush.msra.mxu0 0.0
          %497 = vmatpush.msra.mxu0 0.0
          %498 = vmatpush.msra.mxu0 0.0
          %499 = vmatpush.msra.mxu0 0.0
          %500 = vmatpush.msra.mxu0 0.0
          %501 = vmatpush.msra.mxu0 0.0
          %502 = vmatpush.msra.mxu0 0.0
          %503 = vmatpush.msra.mxu0 %v483
          %504 = vmatpush.msra.mxu0 %v482
          %505 = vmatpush.msra.mxu0 %v481
          %506 = vmatpush.msra.mxu0 %v480
          %507 = vmatmul.f32.gmra.mxu0 %v489
          %v508 = vpop.f32.mrf.mxu0
          %v509 = vadd.f32 %v486, %v508
          %510 = vdwg.mxu0
          %511 = vst [vmem:[%s279] sm:$0xff] %v509
        $region52: #{tpu_custom_call.1} parent=43 // pred_fallthru
          _
        %s512 = sand.u32 %s181, 1
        %s513 = scalar_lea.sflag [#allocation4], %s512
        %s514 = sand.u32 %s181, 1
        %s515 = smul.addr %s514, 8
        %s516 = scalar_lea.vmem [#allocation3], %s515
        // Predicated region
        $region53: #{tpu_custom_call.1} parent=43 // pred_check
          %p517 = pneg %p191
        $region54: #{tpu_custom_call.1} parent=43 // pred_check_branch
          %519 = sbr.rel (%p517) target = $region56
        $region55: #{tpu_custom_call.1} parent=43 // pred_region
          %521 = vsyncadd %s513, 0
          %s522 = smul.addr %s24, 8
          %s523 = scalar_lea.hbm %s6, %s522
          %s525 = sshll.u32 %s516, 4
          %s526 = int_to_ptr.vmem [resolvable:$true] %s525
          %s527 = sshll.u32 %s523, 4
          %s528 = int_to_ptr.hbm [resolvable:$true] %s527
          %530 = dma.vmem_to_hbm [thread:$0]  %s526, 128, %s528, %s513
        $region56: #{tpu_custom_call.1} parent=43 // pred_fallthru
          _
      $region44: #{tpu_custom_call.1} parent=5 // pred_fallthru
        _
      %p531 = scmp.le.s32.totalorder 2, %s15
      // Predicated region
      $region57: #{tpu_custom_call.1} parent=5 // pred_check
        %p532 = pneg %p531
      $region58: #{tpu_custom_call.1} parent=5 // pred_check_branch
        %534 = sbr.rel (%p532) target = $region60
      $region59: #{tpu_custom_call.1} parent=5 // pred_region
        %s535 = ssub.s32 %s15, 2
        // Predicated region
        $region61: #{tpu_custom_call.1} parent=59 // pred_check
          %p536 = pneg %p197
        $region62: #{tpu_custom_call.1} parent=59 // pred_check_branch
          %538 = sbr.rel (%p536) target = $region64
        $region63: #{tpu_custom_call.1} parent=59 // pred_region
          %s539 = sand.u32 %s182, 1
          %s540 = scalar_lea.sflag [#allocation4], %s539
          %s541 = sand.u32 %s182, 1
          %s542 = smul.addr %s541, 8
          %s543 = scalar_lea.vmem [#allocation3], %s542
          %545 = dma.done %s540, 128
        $region64: #{tpu_custom_call.1} parent=59 // pred_fallthru
          _
      $region60: #{tpu_custom_call.1} parent=5 // pred_fallthru
        _
    $region6: #{tpu_custom_call.1} parent=1 // loop_footer
      %s19 = sadd.s32 1, %s15
    $region7: #{tpu_custom_call.1} parent=1 // loop_footer_branch
      %14 = sbr.rel target = $region3
    $region8: #{tpu_custom_call.1} parent=1 // loop_exit
      _
    %546 = vsyncpa [#allocation4], 1
    %s547 = scalar_lea.sflag [#allocation4], 1
    %548 = vsyncpa %s547, 1

</llo_original>
